<compile_context>
chip_gen: v5e
topology: v5e:2x2
jax: 0.10.0
libtpu: 0.0.40
codegen_flags: <defaults>
</compile_context>

<pallas_src>
import functools

import jax
import jax.numpy as jnp
from jax.experimental import pallas as pl
from jax.experimental.pallas import tpu as pltpu

_LANES = 128
_SUBLANES = 8


def _round_up(x, m):
    return (x + m - 1) // m * m


# ----------------------------------------------------------------------------
# Kernels (whole forward pass fused; everything lives in VMEM)
# ----------------------------------------------------------------------------
def _mlp2_kernel(x_ref, w1_ref, b1_ref, w2_ref, b2_ref, w3_ref, b3_ref, o_ref,
                 *, compute_dtype):
    # hidden1 + ReLU  (MXU operands in compute_dtype, f32 accumulate/epilogue)
    h = jnp.dot(x_ref[...], w1_ref[...], preferred_element_type=jnp.float32)
    h = jnp.maximum(h + b1_ref[...], 0.0)
    # hidden2 (no activation, matching the PyTorch forward)
    h = jnp.dot(h.astype(compute_dtype), w2_ref[...],
                preferred_element_type=jnp.float32)
    h = h + b2_ref[...]
    # output layer (N is padded to a lane-dense multiple of 128)
    o = jnp.dot(h.astype(compute_dtype), w3_ref[...],
                preferred_element_type=jnp.float32)
    o_ref[...] = (o + b3_ref[...]).astype(o_ref.dtype)


def _mlp1_kernel(x_ref, w1_ref, b1_ref, w2_ref, b2_ref, o_ref, *, compute_dtype):
    # hidden1 + ReLU
    h = jnp.dot(x_ref[...], w1_ref[...], preferred_element_type=jnp.float32)
    h = jnp.maximum(h + b1_ref[...], 0.0)
    # output layer
    o = jnp.dot(h.astype(compute_dtype), w2_ref[...],
                preferred_element_type=jnp.float32)
    o_ref[...] = (o + b2_ref[...]).astype(o_ref.dtype)


# ----------------------------------------------------------------------------
# Wrapper
# ----------------------------------------------------------------------------
def _full_spec(shape):
    # Whole-array block (legal because block dims equal the full array dims).
    # NOTE: weights are grid-invariant; if they ever become large (non-toy
    # widths), tile W1 along K with a reduction axis and/or set
    # vmem_limit_bytes / pipeline_mode=pl.Buffered(1) to control the
    # double-buffered VMEM footprint (matters most on v7x's 64 MiB VMEM).
    return pl.BlockSpec(shape, lambda i: (0,) * len(shape))


@functools.partial(jax.jit, static_argnames=("block_batch", "compute_dtype"))
def feedforward_forward(x, params, *, block_batch=512,
                        compute_dtype=jnp.bfloat16):
    """Run the fused MLP forward pass.

    x:       [batch, input_size] float32
    params:  tuple of (w, b) pairs, w: [in, out] f32, b: [1, out] f32
    """
    batch, in_features = x.shape
    num_classes = params[-1][0].shape[1]
    n_layers = len(params)

    # Batch tile: largest sublane-aligned tile <= block_batch; zero-pad the
    # batch up to a multiple of it (padded rows are sliced off afterwards).
    bm = min(block_batch, _round_up(batch, _SUBLANES))
    bm = _round_up(bm, _SUBLANES)
    padded_batch = _round_up(batch, bm)

    # Lane-dense output: pad the final width up to a multiple of 128 with
    # zero weight columns / zero bias entries (sliced off afterwards).
    padded_classes = _round_up(num_classes, _LANES)

    x_p = x
    if padded_batch != batch:
        x_p = jnp.pad(x_p, ((0, padded_batch - batch), (0, 0)))
    x_p = x_p.astype(compute_dtype)

    flat = []
    in_specs = [pl.BlockSpec((bm, in_features), lambda i: (i, 0))]
    for li, (w, b) in enumerate(params):
        if li == n_layers - 1 and padded_classes != num_classes:
            w = jnp.pad(w, ((0, 0), (0, padded_classes - num_classes)))
            b = jnp.pad(b, ((0, 0), (0, padded_classes - num_classes)))
        w = w.astype(compute_dtype)      # MXU operand dtype
        b = b.astype(jnp.float32)        # bias add / ReLU stay f32 on the VPU
        flat.extend([w, b])
        in_specs.append(_full_spec(w.shape))
        in_specs.append(_full_spec(b.shape))

    kernel = _mlp2_kernel if n_layers == 3 else _mlp1_kernel
    kernel = functools.partial(kernel, compute_dtype=compute_dtype)

    out = pl.pallas_call(
        kernel,
        out_shape=jax.ShapeDtypeStruct((padded_batch, padded_classes),
                                       jnp.float32),
        grid_spec=pl.GridSpec(
            grid=(padded_batch // bm,),
            in_specs=in_specs,
            out_specs=pl.BlockSpec((bm, padded_classes), lambda i: (i, 0)),
        ),
        compiler_params=pltpu.CompilerParams(
            dimension_semantics=("parallel",),
        ),
    )(x_p, *flat)

    return out[:batch, :num_classes]


# ----------------------------------------------------------------------------
# Params / reference
# ----------------------------------------------------------------------------
def init_params(key, input_size, hidden_size1, num_classes, hidden_size2=None):
    """Deterministic parameter init (uniform, like torch Linear's default)."""
    dims = [input_size, hidden_size1]
    if hidden_size2 is not None:
        dims.append(hidden_size2)
    dims.append(num_classes)

    params = []
    for fan_in, fan_out in zip(dims[:-1], dims[1:]):
        key, kw, kb = jax.random.split(key, 3)
        bound = 1.0 / jnp.sqrt(fan_in)
        # stored as [in, out] (already transposed relative to torch's [out, in])
        w = jax.random.uniform(kw, (fan_in, fan_out), jnp.float32, -bound, bound)
        b = jax.random.uniform(kb, (1, fan_out), jnp.float32, -bound, bound)
        params.append((w, b))
    return tuple(params)


def reference_forward(x, params):
    """Plain-JAX f32 reference matching the PyTorch forward semantics."""
    w1, b1 = params[0]
    h = jnp.maximum(x @ w1 + b1, 0.0)
    if len(params) == 3:
        w2, b2 = params[1]
        w3, b3 = params[2]
        h = h @ w2 + b2          # no relu after hidden2 (matches torch code)
        return h @ w3 + b3
    else:
        w2, b2 = params[1]
        return h @ w2 + b2


if __name__ == "__main__":
    # Small tabular-classifier shapes; batch is NOT a multiple of the tile so
    # the padding path is exercised, and grid length is 2 (megacore-friendly).
    batch = 250
    input_size = 32
    hidden_size1 = 64
    hidden_size2 = 32
    num_classes = 8

    key = jax.random.PRNGKey(0)
    key, kx = jax.random.split(key)
    x = jax.random.normal(kx, (batch, input_size), jnp.float32)

    # --- two-hidden-layer variant, bf16 MXU operands (default) ---
    params2 = init_params(key, input_size, hidden_size1, num_classes, hidden_size2)
    out2 = feedforward_forward(x, params2, block_batch=128)
    out2 = jax.block_until_ready(out2)
    ref2 = reference_forward(x, params2)
    assert out2.shape == (batch, num_classes)
    assert jnp.allclose(out2, ref2, atol=2e-2, rtol=2e-2)

    # --- same variant, full-f32 path (tight tolerance) ---
    out2_f32 = feedforward_forward(x, params2, block_batch=128,
                                   compute_dtype=jnp.float32)
    out2_f32 = jax.block_until_ready(out2_f32)
    assert jnp.allclose(out2_f32, ref2, atol=1e-4, rtol=1e-4)

    # --- one-hidden-layer variant ---
    params1 = init_params(key, input_size, hidden_size1, num_classes, None)
    out1 = feedforward_forward(x, params1, block_batch=128)
    out1 = jax.block_until_ready(out1)
    ref1 = reference_forward(x, params1)
    assert out1.shape == (batch, num_classes)
    assert jnp.allclose(out1, ref1, atol=2e-2, rtol=2e-2)

    print("KERNEL_OK")
</pallas_src>

<mosaic_0001>
module attributes {stable_mosaic.version = 11 : i64} {
  func.func @_mlp2_kernel(%arg0: i32, %arg1: memref<128x32xbf16, #tpu.memory_space<vmem>>, %arg2: memref<32x64xbf16, #tpu.memory_space<vmem>>, %arg3: memref<1x64xf32, #tpu.memory_space<vmem>>, %arg4: memref<64x32xbf16, #tpu.memory_space<vmem>>, %arg5: memref<1x32xf32, #tpu.memory_space<vmem>>, %arg6: memref<32x128xbf16, #tpu.memory_space<vmem>>, %arg7: memref<1x128xf32, #tpu.memory_space<vmem>>, %arg8: memref<128x128xf32, #tpu.memory_space<vmem>>) attributes {dimension_semantics = [#tpu.dimension_semantics<parallel>], iteration_bounds = array<i64: 2>, scalar_prefetch = 0 : i64, scratch_operands = 0 : i64, tpu.core_type = #tpu.core_type<tc>, window_params = [{transform_indices = @transform_0, window_bounds = array<i64: 128, 32>}, {pipeline_mode = #tpu.pipeline_mode<synchronous>, transform_indices = @transform_1, window_bounds = array<i64: 32, 64>}, {pipeline_mode = #tpu.pipeline_mode<synchronous>, transform_indices = @transform_2, window_bounds = array<i64: 1, 64>}, {pipeline_mode = #tpu.pipeline_mode<synchronous>, transform_indices = @transform_3, window_bounds = array<i64: 64, 32>}, {pipeline_mode = #tpu.pipeline_mode<synchronous>, transform_indices = @transform_4, window_bounds = array<i64: 1, 32>}, {pipeline_mode = #tpu.pipeline_mode<synchronous>, transform_indices = @transform_5, window_bounds = array<i64: 32, 128>}, {pipeline_mode = #tpu.pipeline_mode<synchronous>, transform_indices = @transform_6, window_bounds = array<i64: 1, 128>}, {transform_indices = @transform_7, window_bounds = array<i64: 128, 128>}]} {
    %c0 = arith.constant 0 : index
    %c0_0 = arith.constant 0 : index
    %0 = vector.load %arg1[%c0, %c0_0] : memref<128x32xbf16, #tpu.memory_space<vmem>>, vector<128x32xbf16>
    %c0_1 = arith.constant 0 : index
    %c0_2 = arith.constant 0 : index
    %1 = vector.load %arg2[%c0_1, %c0_2] : memref<32x64xbf16, #tpu.memory_space<vmem>>, vector<32x64xbf16>
    %cst = arith.constant dense<0.000000e+00> : vector<128x64xf32>
    %2 = tpu.matmul %0, %1, %cst {dimension_numbers = #tpu.dot_dimension_numbers<[1], [0], [0], [1], [0, 0, 1, 1], [], []>} : vector<128x32xbf16>, vector<32x64xbf16>, vector<128x64xf32> -> vector<128x64xf32>
    %c0_3 = arith.constant 0 : index
    %c0_4 = arith.constant 0 : index
    %3 = vector.load %arg3[%c0_3, %c0_4] : memref<1x64xf32, #tpu.memory_space<vmem>>, vector<1x64xf32>
    %4 = vector.broadcast %3 : vector<1x64xf32> to vector<128x64xf32>
    %5 = arith.addf %2, %4 : vector<128x64xf32>
    %cst_5 = arith.constant 0.000000e+00 : f32
    %6 = vector.broadcast %cst_5 : f32 to vector<128x64xf32>
    %7 = arith.maximumf %5, %6 : vector<128x64xf32>
    %8 = arith.truncf %7 : vector<128x64xf32> to vector<128x64xbf16>
    %c0_6 = arith.constant 0 : index
    %c0_7 = arith.constant 0 : index
    %9 = vector.load %arg4[%c0_6, %c0_7] : memref<64x32xbf16, #tpu.memory_space<vmem>>, vector<64x32xbf16>
    %cst_8 = arith.constant dense<0.000000e+00> : vector<128x32xf32>
    %10 = tpu.matmul %8, %9, %cst_8 {dimension_numbers = #tpu.dot_dimension_numbers<[1], [0], [0], [1], [0, 0, 1, 1], [], []>} : vector<128x64xbf16>, vector<64x32xbf16>, vector<128x32xf32> -> vector<128x32xf32>
    %c0_9 = arith.constant 0 : index
    %c0_10 = arith.constant 0 : index
    %11 = vector.load %arg5[%c0_9, %c0_10] : memref<1x32xf32, #tpu.memory_space<vmem>>, vector<1x32xf32>
    %12 = vector.broadcast %11 : vector<1x32xf32> to vector<128x32xf32>
    %13 = arith.addf %10, %12 : vector<128x32xf32>
    %14 = arith.truncf %13 : vector<128x32xf32> to vector<128x32xbf16>
    %c0_11 = arith.constant 0 : index
    %c0_12 = arith.constant 0 : index
    %15 = vector.load %arg6[%c0_11, %c0_12] : memref<32x128xbf16, #tpu.memory_space<vmem>>, vector<32x128xbf16>
    %cst_13 = arith.constant dense<0.000000e+00> : vector<128x128xf32>
    %16 = tpu.matmul %14, %15, %cst_13 {dimension_numbers = #tpu.dot_dimension_numbers<[1], [0], [0], [1], [0, 0, 1, 1], [], []>} : vector<128x32xbf16>, vector<32x128xbf16>, vector<128x128xf32> -> vector<128x128xf32>
    %c0_14 = arith.constant 0 : index
    %c0_15 = arith.constant 0 : index
    %17 = vector.load %arg7[%c0_14, %c0_15] : memref<1x128xf32, #tpu.memory_space<vmem>>, vector<1x128xf32>
    %18 = vector.broadcast %17 : vector<1x128xf32> to vector<128x128xf32>
    %19 = arith.addf %16, %18 : vector<128x128xf32>
    %c0_16 = arith.constant 0 : index
    %c0_17 = arith.constant 0 : index
    %20 = vector.load %arg8[%c0_16, %c0_17] : memref<128x128xf32, #tpu.memory_space<vmem>>, vector<128x128xf32>
    tpu.vector_store %arg8[%c0_16, %c0_17], %19 {strides = array<i32>} : memref<128x128xf32, #tpu.memory_space<vmem>>, vector<128x128xf32>,
    return
  }
  func.func @transform_0(%arg0: i32) -> (i32, i32) {
    %c0_i32 = arith.constant 0 : i32
    %c0_i32_0 = arith.constant 0 : i32
    return %arg0, %c0_i32 : i32, i32
  }
  func.func @transform_1(%arg0: i32) -> (i32, i32) {
    %c0_i32 = arith.constant 0 : i32
    %c0_i32_0 = arith.constant 0 : i32
    %c0_i32_1 = arith.constant 0 : i32
    return %c0_i32, %c0_i32_0 : i32, i32
  }
  func.func @transform_2(%arg0: i32) -> (i32, i32) {
    %c0_i32 = arith.constant 0 : i32
    %c0_i32_0 = arith.constant 0 : i32
    %c0_i32_1 = arith.constant 0 : i32
    return %c0_i32, %c0_i32_0 : i32, i32
  }
  func.func @transform_3(%arg0: i32) -> (i32, i32) {
    %c0_i32 = arith.constant 0 : i32
    %c0_i32_0 = arith.constant 0 : i32
    %c0_i32_1 = arith.constant 0 : i32
    return %c0_i32, %c0_i32_0 : i32, i32
  }
  func.func @transform_4(%arg0: i32) -> (i32, i32) {
    %c0_i32 = arith.constant 0 : i32
    %c0_i32_0 = arith.constant 0 : i32
    %c0_i32_1 = arith.constant 0 : i32
    return %c0_i32, %c0_i32_0 : i32, i32
  }
  func.func @transform_5(%arg0: i32) -> (i32, i32) {
    %c0_i32 = arith.constant 0 : i32
    %c0_i32_0 = arith.constant 0 : i32
    %c0_i32_1 = arith.constant 0 : i32
    return %c0_i32, %c0_i32_0 : i32, i32
  }
  func.func @transform_6(%arg0: i32) -> (i32, i32) {
    %c0_i32 = arith.constant 0 : i32
    %c0_i32_0 = arith.constant 0 : i32
    %c0_i32_1 = arith.constant 0 : i32
    return %c0_i32, %c0_i32_0 : i32, i32
  }
  func.func @transform_7(%arg0: i32) -> (i32, i32) {
    %c0_i32 = arith.constant 0 : i32
    %c0_i32_0 = arith.constant 0 : i32
    return %arg0, %c0_i32 : i32, i32
  }
}

</mosaic_0001>

<llo_original>
// kernel: feedforward_forward.1
$region0: #{feedforward_forward.1}
  #allocation0 [shape = 'u32[]', space=smem, size = 0x4, offset = 0x4, fixed_abs, tag = 'smem constant byte address 0x4 - core index']
  #allocation1 [shape = 'u32[72,128]{1,0:T(1,128)}', space=vmem, size = 0x9000, scoped, tag = 'internal scratch']
  %s0 = inlined_call_operand.vmem [shape: bf16[256,32], index: 0, kind: input, shape index: {}]
  %s1 = inlined_call_operand.vmem [shape: bf16[32,64], index: 1, kind: input, shape index: {}]
  %s2 = inlined_call_operand.vmem [shape: f32[1,64], index: 2, kind: input, shape index: {}]
  %s3 = inlined_call_operand.vmem [shape: bf16[64,32], index: 3, kind: input, shape index: {}]
  %s4 = inlined_call_operand.vmem [shape: f32[1,32], index: 4, kind: input, shape index: {}]
  %s5 = inlined_call_operand.vmem [shape: bf16[32,128], index: 5, kind: input, shape index: {}]
  %s6 = inlined_call_operand.vmem [shape: f32[1,128], index: 6, kind: input, shape index: {}]
  %s7 = inlined_call_operand.vmem [shape: f32[256,128], index: 7, kind: output, shape index: {}]
  %s8 = sld [smem:[#allocation0]]
  $region61: #{feedforward_forward.1} parent=0
    _
  %s10 = ssub.s32 1, %s8
  %s11 = scalar_select 0, %s10, %s8
  loop: start=0, step=1, limit=4
  $region2: #{feedforward_forward.1} parent=0 // loop_pre_header
    _
  $region3: #{feedforward_forward.1} parent=0 // loop_header
    %s13 = sphi 0, %s17
    %p14 = scmp.ge.s32.totalorder %s13, 4
    %s23 = sphi 0, %s25
    %s26 = sphi 0, %s23
    %s27 = sphi 0, %s26
    %s43 = sphi 0, %s27
    %s47 = sphi 0, %s47
    %s49 = sphi 0, %s47
    %s50 = sphi 0, %s49
    %s64 = sphi 0, %s50
    %s68 = sphi 0, %s68
    %s70 = sphi 0, %s68
    %s71 = sphi 0, %s70
    %s85 = sphi 0, %s71
    %s89 = sphi 0, %s89
    %s91 = sphi 0, %s89
    %s92 = sphi 0, %s91
    %s106 = sphi 0, %s92
    %s110 = sphi 0, %s110
    %s112 = sphi 0, %s110
    %s113 = sphi 0, %s112
    %s127 = sphi 0, %s113
    %s131 = sphi 0, %s131
    %s133 = sphi 0, %s131
    %s134 = sphi 0, %s133
    %s148 = sphi 0, %s134
    %s152 = sphi 0, %s152
    %s154 = sphi 0, %s152
    %s155 = sphi 0, %s154
    %s169 = sphi 0, %s155
    %s175 = sphi 0, %s177
    %s178 = sphi 0, %s175
    %s179 = sphi 0, %s178
    %s195 = sphi 0, %s179
  $region4: #{feedforward_forward.1} parent=0 // loop_header_branch
    %16 = sbr.rel (%p14) target = $region8
  $region5: #{feedforward_forward.1} parent=0 // loop_body
    %s18 = ssub.s32 %s13, 1
    %s19 = ssub.s32 %s13, 2
    %s20 = sadd.s32 %s13, 1
    %s21 = ssub.s32 %s13, %s20
    %p22 = scmp.eq.s32.totalorder %s21, 0
    %s24 = sadd.s32 %s23, 1
    %s25 = scalar_select %p22, %s23, %s24
    %p28 = pneg %p22
    %p29 = scmp.eq.s32.totalorder %s13, 1
    %p30 = por %p28, %p29
    %p31 = scmp.ne.s32.totalorder %s23, %s26
    %p32 = scmp.eq.s32.totalorder %s13, 0
    %p33 = por %p31, %p32
    %p34 = scmp.ne.s32.totalorder %s23, %s26
    %p35 = scmp.eq.s32.totalorder %s18, 1
    %p36 = por %p34, %p35
    %p37 = scmp.ne.s32.totalorder %s26, %s27
    %p38 = scmp.eq.s32.totalorder %s18, 0
    %p39 = por %p37, %p38
    %p40 = scmp.ne.s32.totalorder %s26, %s27
    %p41 = scmp.eq.s32.totalorder %s19, 1
    %p42 = por %p40, %p41
    %p44 = scmp.ne.s32.totalorder %s27, %s43
    %p45 = scmp.eq.s32.totalorder %s19, 0
    %p46 = por %p44, %p45
    %s48 = sadd.s32 %s47, 1
    %p51 = scmp.eq.s32.totalorder %s13, 1
    %p52 = scmp.ne.s32.totalorder %s47, %s49
    %p53 = scmp.eq.s32.totalorder %s13, 0
    %p54 = por %p52, %p53
    %p55 = scmp.ne.s32.totalorder %s47, %s49
    %p56 = scmp.eq.s32.totalorder %s18, 1
    %p57 = por %p55, %p56
    %p58 = scmp.ne.s32.totalorder %s49, %s50
    %p59 = scmp.eq.s32.totalorder %s18, 0
    %p60 = por %p58, %p59
    %p61 = scmp.ne.s32.totalorder %s49, %s50
    %p62 = scmp.eq.s32.totalorder %s19, 1
    %p63 = por %p61, %p62
    %p65 = scmp.ne.s32.totalorder %s50, %s64
    %p66 = scmp.eq.s32.totalorder %s19, 0
    %p67 = por %p65, %p66
    %s69 = sadd.s32 %s68, 1
    %p72 = scmp.eq.s32.totalorder %s13, 1
    %p73 = scmp.ne.s32.totalorder %s68, %s70
    %p74 = scmp.eq.s32.totalorder %s13, 0
    %p75 = por %p73, %p74
    %p76 = scmp.ne.s32.totalorder %s68, %s70
    %p77 = scmp.eq.s32.totalorder %s18, 1
    %p78 = por %p76, %p77
    %p79 = scmp.ne.s32.totalorder %s70, %s71
    %p80 = scmp.eq.s32.totalorder %s18, 0
    %p81 = por %p79, %p80
    %p82 = scmp.ne.s32.totalorder %s70, %s71
    %p83 = scmp.eq.s32.totalorder %s19, 1
    %p84 = por %p82, %p83
    %p86 = scmp.ne.s32.totalorder %s71, %s85
    %p87 = scmp.eq.s32.totalorder %s19, 0
    %p88 = por %p86, %p87
    %s90 = sadd.s32 %s89, 1
    %p93 = scmp.eq.s32.totalorder %s13, 1
    %p94 = scmp.ne.s32.totalorder %s89, %s91
    %p95 = scmp.eq.s32.totalorder %s13, 0
    %p96 = por %p94, %p95
    %p97 = scmp.ne.s32.totalorder %s89, %s91
    %p98 = scmp.eq.s32.totalorder %s18, 1
    %p99 = por %p97, %p98
    %p100 = scmp.ne.s32.totalorder %s91, %s92
    %p101 = scmp.eq.s32.totalorder %s18, 0
    %p102 = por %p100, %p101
    %p103 = scmp.ne.s32.totalorder %s91, %s92
    %p104 = scmp.eq.s32.totalorder %s19, 1
    %p105 = por %p103, %p104
    %p107 = scmp.ne.s32.totalorder %s92, %s106
    %p108 = scmp.eq.s32.totalorder %s19, 0
    %p109 = por %p107, %p108
    %s111 = sadd.s32 %s110, 1
    %p114 = scmp.eq.s32.totalorder %s13, 1
    %p115 = scmp.ne.s32.totalorder %s110, %s112
    %p116 = scmp.eq.s32.totalorder %s13, 0
    %p117 = por %p115, %p116
    %p118 = scmp.ne.s32.totalorder %s110, %s112
    %p119 = scmp.eq.s32.totalorder %s18, 1
    %p120 = por %p118, %p119
    %p121 = scmp.ne.s32.totalorder %s112, %s113
    %p122 = scmp.eq.s32.totalorder %s18, 0
    %p123 = por %p121, %p122
    %p124 = scmp.ne.s32.totalorder %s112, %s113
    %p125 = scmp.eq.s32.totalorder %s19, 1
    %p126 = por %p124, %p125
    %p128 = scmp.ne.s32.totalorder %s113, %s127
    %p129 = scmp.eq.s32.totalorder %s19, 0
    %p130 = por %p128, %p129
    %s132 = sadd.s32 %s131, 1
    %p135 = scmp.eq.s32.totalorder %s13, 1
    %p136 = scmp.ne.s32.totalorder %s131, %s133
    %p137 = scmp.eq.s32.totalorder %s13, 0
    %p138 = por %p136, %p137
    %p139 = scmp.ne.s32.totalorder %s131, %s133
    %p140 = scmp.eq.s32.totalorder %s18, 1
    %p141 = por %p139, %p140
    %p142 = scmp.ne.s32.totalorder %s133, %s134
    %p143 = scmp.eq.s32.totalorder %s18, 0
    %p144 = por %p142, %p143
    %p145 = scmp.ne.s32.totalorder %s133, %s134
    %p146 = scmp.eq.s32.totalorder %s19, 1
    %p147 = por %p145, %p146
    %p149 = scmp.ne.s32.totalorder %s134, %s148
    %p150 = scmp.eq.s32.totalorder %s19, 0
    %p151 = por %p149, %p150
    %s153 = sadd.s32 %s152, 1
    %p156 = scmp.eq.s32.totalorder %s13, 1
    %p157 = scmp.ne.s32.totalorder %s152, %s154
    %p158 = scmp.eq.s32.totalorder %s13, 0
    %p159 = por %p157, %p158
    %p160 = scmp.ne.s32.totalorder %s152, %s154
    %p161 = scmp.eq.s32.totalorder %s18, 1
    %p162 = por %p160, %p161
    %p163 = scmp.ne.s32.totalorder %s154, %s155
    %p164 = scmp.eq.s32.totalorder %s18, 0
    %p165 = por %p163, %p164
    %p166 = scmp.ne.s32.totalorder %s154, %s155
    %p167 = scmp.eq.s32.totalorder %s19, 1
    %p168 = por %p166, %p167
    %p170 = scmp.ne.s32.totalorder %s155, %s169
    %p171 = scmp.eq.s32.totalorder %s19, 0
    %p172 = por %p170, %p171
    %s173 = ssub.s32 %s13, %s20
    %p174 = scmp.eq.s32.totalorder %s173, 0
    %s176 = sadd.s32 %s175, 1
    %s177 = scalar_select %p174, %s175, %s176
    %p180 = pneg %p174
    %p181 = scmp.eq.s32.totalorder %s13, 1
    %p182 = por %p180, %p181
    %p183 = scmp.ne.s32.totalorder %s175, %s178
    %p184 = scmp.eq.s32.totalorder %s13, 0
    %p185 = por %p183, %p184
    %p186 = scmp.ne.s32.totalorder %s175, %s178
    %p187 = scmp.eq.s32.totalorder %s18, 1
    %p188 = por %p186, %p187
    %p189 = scmp.ne.s32.totalorder %s178, %s179
    %p190 = scmp.eq.s32.totalorder %s18, 0
    %p191 = por %p189, %p190
    %p192 = scmp.ne.s32.totalorder %s178, %s179
    %p193 = scmp.eq.s32.totalorder %s19, 1
    %p194 = por %p192, %p193
    %p196 = scmp.ne.s32.totalorder %s179, %s195
    %p197 = scmp.eq.s32.totalorder %s19, 0
    %p198 = por %p196, %p197
    %p199 = scmp.le.s32.totalorder 1, %s13
    %p200 = scmp.lt.s32.totalorder %s13, 3
    %p201 = pnand %p199, %p200
    %p202 = pneg %p201
    // Predicated region
    $region9: #{feedforward_forward.1} parent=5 // pred_check
      _
    $region10: #{feedforward_forward.1} parent=5 // pred_check_branch
      %204 = sbr.rel (%p201) target = $region12
    $region11: #{feedforward_forward.1} parent=5 // pred_region
      %s205 = ssub.s32 %s13, 1
      // Predicated region
      $region13: #{feedforward_forward.1} parent=11 // pred_check
        %p206 = pneg %p60
      $region14: #{feedforward_forward.1} parent=11 // pred_check_branch
        %208 = sbr.rel (%p206) target = $region16
      $region15: #{feedforward_forward.1} parent=11 // pred_region
        _
      $region16: #{feedforward_forward.1} parent=11 // pred_fallthru
        _
      // Predicated region
      $region17: #{feedforward_forward.1} parent=11 // pred_check
        %p209 = pneg %p81
      $region18: #{feedforward_forward.1} parent=11 // pred_check_branch
        %211 = sbr.rel (%p209) target = $region20
      $region19: #{feedforward_forward.1} parent=11 // pred_region
        _
      $region20: #{feedforward_forward.1} parent=11 // pred_fallthru
        _
      // Predicated region
      $region21: #{feedforward_forward.1} parent=11 // pred_check
        %p212 = pneg %p102
      $region22: #{feedforward_forward.1} parent=11 // pred_check_branch
        %214 = sbr.rel (%p212) target = $region24
      $region23: #{feedforward_forward.1} parent=11 // pred_region
        _
      $region24: #{feedforward_forward.1} parent=11 // pred_fallthru
        _
      // Predicated region
      $region25: #{feedforward_forward.1} parent=11 // pred_check
        %p215 = pneg %p123
      $region26: #{feedforward_forward.1} parent=11 // pred_check_branch
        %217 = sbr.rel (%p215) target = $region28
      $region27: #{feedforward_forward.1} parent=11 // pred_region
        _
      $region28: #{feedforward_forward.1} parent=11 // pred_fallthru
        _
      // Predicated region
      $region29: #{feedforward_forward.1} parent=11 // pred_check
        %p218 = pneg %p144
      $region30: #{feedforward_forward.1} parent=11 // pred_check_branch
        %220 = sbr.rel (%p218) target = $region32
      $region31: #{feedforward_forward.1} parent=11 // pred_region
        _
      $region32: #{feedforward_forward.1} parent=11 // pred_fallthru
        _
      // Predicated region
      $region33: #{feedforward_forward.1} parent=11 // pred_check
        %p221 = pneg %p165
      $region34: #{feedforward_forward.1} parent=11 // pred_check_branch
        %223 = sbr.rel (%p221) target = $region36
      $region35: #{feedforward_forward.1} parent=11 // pred_region
        _
      $region36: #{feedforward_forward.1} parent=11 // pred_fallthru
        _
    $region12: #{feedforward_forward.1} parent=5 // pred_fallthru
      _
    %p224 = scmp.lt.s32.totalorder %s13, 2
    // Predicated region
    $region37: #{feedforward_forward.1} parent=5 // pred_check
      %p225 = pneg %p224
    $region38: #{feedforward_forward.1} parent=5 // pred_check_branch
      %227 = sbr.rel (%p225) target = $region40
    $region39: #{feedforward_forward.1} parent=5 // pred_region
      // Predicated region
      $region41: #{feedforward_forward.1} parent=39 // pred_check
        %p228 = pneg %p33
      $region42: #{feedforward_forward.1} parent=39 // pred_check_branch
        %230 = sbr.rel (%p228) target = $region44
      $region43: #{feedforward_forward.1} parent=39 // pred_region
        %s231 = smul.u32 16, %s13
        %p232 = scmp.lt.s32.totalorder %s231, 31
        %s233 = scalar_select %p232, %s231, 31
        %s234 = smul.addr %s233, 4
        %s235 = scalar_lea.vmem %s0, %s234
        %s236 = smul.u32 16, %s13
      $region44: #{feedforward_forward.1} parent=39 // pred_fallthru
        _
    $region40: #{feedforward_forward.1} parent=5 // pred_fallthru
      _
    %p237 = scmp.le.s32.totalorder 1, %s13
    %p238 = scmp.lt.s32.totalorder %s13, 3
    %p239 = pnand %p237, %p238
    %p240 = pneg %p239
    // Predicated region
    $region45: #{feedforward_forward.1} parent=5 // pred_check
      _
    $region46: #{feedforward_forward.1} parent=5 // pred_check_branch
      %242 = sbr.rel (%p239) target = $region48
    $region47: #{feedforward_forward.1} parent=5 // pred_region
      %s243 = ssub.s32 %s13, 1
      %s244 = smul.u32 16, %s18
      %p245 = scmp.lt.s32.totalorder %s244, 31
      %s246 = scalar_select %p245, %s244, 31
      %s247 = smul.addr %s246, 4
      %s248 = scalar_lea.vmem %s0, %s247
      %p249 = pneg %p39
      %p250 = pneg %p36
      %p251 = pneg %p60
      %p252 = pneg %p57
      %p253 = pneg %p81
      %p254 = pneg %p78
      %p255 = pneg %p102
      %p256 = pneg %p99
      %p257 = pneg %p123
      %p258 = pneg %p120
      %p259 = pneg %p144
      %p260 = pneg %p141
      %p261 = pneg %p165
      %p262 = pneg %p162
      %p263 = pneg %p191
      %p264 = pneg %p188
      %s265 = smul.u32 16, %s18
      %p266 = scmp.lt.s32.totalorder %s265, 31
      %s267 = scalar_select %p266, %s265, 31
      %s268 = smul.addr %s267, 8
      %s269 = scalar_lea.vmem %s7, %s268
      %s270 = smul.u32 16, %s18
      %p271 = scmp.lt.s32.totalorder %s270, 31
      %s272 = scalar_select %p271, %s270, 31
      %s273 = smul.addr %s272, 4
      %s274 = scalar_lea.vmem %s0, %s273
      %s275 = smul.u32 16, %s18
      %s276 = smul.u32 16, %s18
      %p277 = scmp.lt.s32.totalorder %s276, 31
      %s278 = scalar_select %p277, %s276, 31
      %s279 = smul.addr %s278, 8
      %s280 = scalar_lea.vmem %s7, %s279
      %s281 = smul.u32 16, %s18
      %v283 = vld [vmem:[%s274] sm:$0xf]
      %v284 = vld [vmem:[%s274 + $0x4] sm:$0xf]
      %v285 = vld [vmem:[%s274 + $0x8] sm:$0xf]
      %v286 = vld [vmem:[%s274 + $0xc] sm:$0xf]
      %v287 = vld [vmem:[%s274 + $0x10] sm:$0xf]
      %v288 = vld [vmem:[%s274 + $0x14] sm:$0xf]
      %v289 = vld [vmem:[%s274 + $0x18] sm:$0xf]
      %v290 = vld [vmem:[%s274 + $0x1c] sm:$0xf]
      %v291 = vld [vmem:[%s274 + $0x20] sm:$0xf]
      %v292 = vld [vmem:[%s274 + $0x24] sm:$0xf]
      %v293 = vld [vmem:[%s274 + $0x28] sm:$0xf]
      %v294 = vld [vmem:[%s274 + $0x2c] sm:$0xf]
      %v295 = vld [vmem:[%s274 + $0x30] sm:$0xf]
      %v296 = vld [vmem:[%s274 + $0x34] sm:$0xf]
      %v297 = vld [vmem:[%s274 + $0x38] sm:$0xf]
      %v298 = vld [vmem:[%s274 + $0x3c] sm:$0xf]
      %v299 = vld [vmem:[%s1] sm:$0xf]
      %v300 = vld [vmem:[%s1 + $0x4] sm:$0xf]
      %v301 = vld [vmem:[%s1 + $0x8] sm:$0xf]
      %v302 = vld [vmem:[%s1 + $0xc] sm:$0xf]
      %v303 = vld [vmem:[%s2] sm:$0x1]
      %v305 = vperm.slane %v303, 0
      %v323 = vunpack.c.l.b16 %v283
      %v324 = vunpack.c.l.b16 %v284
      %v325 = vunpack.c.l.b16 %v285
      %v326 = vunpack.c.l.b16 %v286
      %v327 = vunpack.c.l.b16 %v287
      %v328 = vunpack.c.l.b16 %v288
      %v329 = vunpack.c.l.b16 %v289
      %v330 = vunpack.c.l.b16 %v290
      %v331 = vunpack.c.l.b16 %v291
      %v332 = vunpack.c.l.b16 %v292
      %v333 = vunpack.c.l.b16 %v293
      %v334 = vunpack.c.l.b16 %v294
      %v335 = vunpack.c.l.b16 %v295
      %v336 = vunpack.c.l.b16 %v296
      %v337 = vunpack.c.l.b16 %v297
      %v338 = vunpack.c.l.b16 %v298
      %v339 = vpack.c.b16 %v324, %v323
      %v340 = vpack.c.b16 %v326, %v325
      %v341 = vpack.c.b16 %v328, %v327
      %v342 = vpack.c.b16 %v330, %v329
      %v343 = vpack.c.b16 %v332, %v331
      %v344 = vpack.c.b16 %v334, %v333
      %v345 = vpack.c.b16 %v336, %v335
      %v346 = vpack.c.b16 %v338, %v337
      %v351 = vunpack.c.l.b16 %v299
      %v352 = vunpack.c.l.b16 %v300
      %v353 = vunpack.c.l.b16 %v301
      %v354 = vunpack.c.l.b16 %v302
      %v355 = vpack.c.b16 %v352, %v351
      %v356 = vpack.c.b16 %v354, %v353
      %vm359 = vcmask 261120
      %v361 = vsel %vm359, %v339, 0
      %v364 = vsel %vm359, %v340, 0
      %v367 = vsel %vm359, %v341, 0
      %v370 = vsel %vm359, %v342, 0
      %v373 = vsel %vm359, %v343, 0
      %v376 = vsel %vm359, %v344, 0
      %v379 = vsel %vm359, %v345, 0
      %v382 = vsel %vm359, %v346, 0
      %384 = vmatpush.bf16.msra.mxu0 0
      %385 = vmatpush.bf16.msra.mxu0 0
      %386 = vmatpush.bf16.msra.mxu0 0
      %387 = vmatpush.bf16.msra.mxu0 0
      %388 = vmatpush.bf16.msra.mxu0 0
      %389 = vmatpush.bf16.msra.mxu0 0
      %390 = vmatpush.bf16.msra.mxu0 %v356
      %391 = vmatpush.bf16.msra.mxu0 %v355
      %392 = vmatmul.bf16.gmra.mxu0 %v361
      %v393 = vpop.f32.mrf.mxu0
      %v394 = vadd.f32 %v305, %v393
      %v395 = vpop.f32.mrf.mxu0
      %v396 = vadd.f32 %v305, %v395
      %397 = vmatmul.bf16.gmra.mxu0 %v364
      %v398 = vpop.f32.mrf.mxu0
      %v399 = vadd.f32 %v305, %v398
      %v400 = vpop.f32.mrf.mxu0
      %v401 = vadd.f32 %v305, %v400
      %402 = vmatmul.bf16.gmra.mxu0 %v367
      %v403 = vpop.f32.mrf.mxu0
      %v404 = vadd.f32 %v305, %v403
      %v405 = vpop.f32.mrf.mxu0
      %v406 = vadd.f32 %v305, %v405
      %407 = vmatmul.bf16.gmra.mxu0 %v370
      %v408 = vpop.f32.mrf.mxu0
      %v409 = vadd.f32 %v305, %v408
      %v410 = vpop.f32.mrf.mxu0
      %v411 = vadd.f32 %v305, %v410
      %412 = vmatmul.bf16.gmra.mxu0 %v373
      %v413 = vpop.f32.mrf.mxu0
      %v414 = vadd.f32 %v305, %v413
      %v415 = vpop.f32.mrf.mxu0
      %v416 = vadd.f32 %v305, %v415
      %417 = vmatmul.bf16.gmra.mxu0 %v376
      %v418 = vpop.f32.mrf.mxu0
      %v419 = vadd.f32 %v305, %v418
      %v420 = vpop.f32.mrf.mxu0
      %v421 = vadd.f32 %v305, %v420
      %422 = vmatmul.bf16.gmra.mxu0 %v379
      %v423 = vpop.f32.mrf.mxu0
      %v424 = vadd.f32 %v305, %v423
      %v425 = vpop.f32.mrf.mxu0
      %v426 = vadd.f32 %v305, %v425
      %427 = vmatmul.bf16.gmra.mxu0 %v382
      %v428 = vpop.f32.mrf.mxu0
      %v429 = vadd.f32 %v305, %v428
      %v430 = vpop.f32.mrf.mxu0
      %v431 = vadd.f32 %v305, %v430
      %432 = vdwg.mxu0
      %v433 = vmax.f32 %v394, 0.0
      %v434 = vmax.f32 %v396, 0.0
      %v435 = vmax.f32 %v399, 0.0
      %v436 = vmax.f32 %v401, 0.0
      %v437 = vmax.f32 %v404, 0.0
      %v438 = vmax.f32 %v406, 0.0
      %v439 = vmax.f32 %v409, 0.0
      %v440 = vmax.f32 %v411, 0.0
      %v441 = vmax.f32 %v414, 0.0
      %v442 = vmax.f32 %v416, 0.0
      %v443 = vmax.f32 %v419, 0.0
      %v444 = vmax.f32 %v421, 0.0
      %v445 = vmax.f32 %v424, 0.0
      %v446 = vmax.f32 %v426, 0.0
      %v447 = vmax.f32 %v429, 0.0
      %v448 = vmax.f32 %v431, 0.0
      %v449 = vpack.c.bf16 %v434, %v433
      %v450 = vpack.c.bf16 %v436, %v435
      %v451 = vpack.c.bf16 %v438, %v437
      %v452 = vpack.c.bf16 %v440, %v439
      %v453 = vpack.c.bf16 %v442, %v441
      %v454 = vpack.c.bf16 %v444, %v443
      %v455 = vpack.c.bf16 %v446, %v445
      %v456 = vpack.c.bf16 %v448, %v447
      %v457 = vld [vmem:[%s3] sm:$0xf]
      %v458 = vld [vmem:[%s3 + $0x4] sm:$0xf]
      %v459 = vld [vmem:[%s3 + $0x8] sm:$0xf]
      %v460 = vld [vmem:[%s3 + $0xc] sm:$0xf]
      %v461 = vld [vmem:[%s3 + $0x10] sm:$0xf]
      %v462 = vld [vmem:[%s3 + $0x14] sm:$0xf]
      %v463 = vld [vmem:[%s3 + $0x18] sm:$0xf]
      %v464 = vld [vmem:[%s3 + $0x1c] sm:$0xf]
      %v465 = vld [vmem:[%s4] sm:$0x1]
      %v467 = vperm.slane %v465, 0
      %v477 = vunpack.c.l.b16 %v457
      %v478 = vunpack.c.l.b16 %v458
      %v479 = vunpack.c.l.b16 %v459
      %v480 = vunpack.c.l.b16 %v460
      %v481 = vunpack.c.l.b16 %v461
      %v482 = vunpack.c.l.b16 %v462
      %v483 = vunpack.c.l.b16 %v463
      %v484 = vunpack.c.l.b16 %v464
      %v485 = vpack.c.b16 %v478, %v477
      %v486 = vpack.c.b16 %v480, %v479
      %v487 = vpack.c.b16 %v482, %v481
      %v488 = vpack.c.b16 %v484, %v483
      %vm493 = vcmask 523264
      %v495 = vsel %vm493, %v449, 0
      %v498 = vsel %vm493, %v450, 0
      %v501 = vsel %vm493, %v451, 0
      %v504 = vsel %vm493, %v452, 0
      %v507 = vsel %vm493, %v453, 0
      %v510 = vsel %vm493, %v454, 0
      %v513 = vsel %vm493, %v455, 0
      %v516 = vsel %vm493, %v456, 0
      %518 = vmatpush.bf16.msra.mxu0 0
      %519 = vmatpush.bf16.msra.mxu0 0
      %520 = vmatpush.bf16.msra.mxu0 0
      %521 = vmatpush.bf16.msra.mxu0 0
      %522 = vmatpush.bf16.msra.mxu0 %v488
      %523 = vmatpush.bf16.msra.mxu0 %v487
      %524 = vmatpush.bf16.msra.mxu0 %v486
      %525 = vmatpush.bf16.msra.mxu0 %v485
      %526 = vmatmul.bf16.gmra.mxu0 %v495
      %v527 = vpop.f32.mrf.mxu0
      %v528 = vadd.f32 %v467, %v527
      %v529 = vpop.f32.mrf.mxu0
      %v530 = vadd.f32 %v467, %v529
      %531 = vmatmul.bf16.gmra.mxu0 %v498
      %v532 = vpop.f32.mrf.mxu0
      %v533 = vadd.f32 %v467, %v532
      %v534 = vpop.f32.mrf.mxu0
      %v535 = vadd.f32 %v467, %v534
      %536 = vmatmul.bf16.gmra.mxu0 %v501
      %v537 = vpop.f32.mrf.mxu0
      %v538 = vadd.f32 %v467, %v537
      %v539 = vpop.f32.mrf.mxu0
      %v540 = vadd.f32 %v467, %v539
      %541 = vmatmul.bf16.gmra.mxu0 %v504
      %v542 = vpop.f32.mrf.mxu0
      %v543 = vadd.f32 %v467, %v542
      %v544 = vpop.f32.mrf.mxu0
      %v545 = vadd.f32 %v467, %v544
      %546 = vmatmul.bf16.gmra.mxu0 %v507
      %v547 = vpop.f32.mrf.mxu0
      %v548 = vadd.f32 %v467, %v547
      %v549 = vpop.f32.mrf.mxu0
      %v550 = vadd.f32 %v467, %v549
      %551 = vmatmul.bf16.gmra.mxu0 %v510
      %v552 = vpop.f32.mrf.mxu0
      %v553 = vadd.f32 %v467, %v552
      %v554 = vpop.f32.mrf.mxu0
      %v555 = vadd.f32 %v467, %v554
      %556 = vmatmul.bf16.gmra.mxu0 %v513
      %v557 = vpop.f32.mrf.mxu0
      %v558 = vadd.f32 %v467, %v557
      %v559 = vpop.f32.mrf.mxu0
      %v560 = vadd.f32 %v467, %v559
      %561 = vmatmul.bf16.gmra.mxu0 %v516
      %v562 = vpop.f32.mrf.mxu0
      %v563 = vadd.f32 %v467, %v562
      %v564 = vpop.f32.mrf.mxu0
      %v565 = vadd.f32 %v467, %v564
      %566 = vdwg.mxu0
      %v567 = vpack.c.bf16 %v530, %v528
      %v568 = vpack.c.bf16 %v535, %v533
      %v569 = vpack.c.bf16 %v540, %v538
      %v570 = vpack.c.bf16 %v545, %v543
      %v571 = vpack.c.bf16 %v550, %v548
      %v572 = vpack.c.bf16 %v555, %v553
      %v573 = vpack.c.bf16 %v560, %v558
      %v574 = vpack.c.bf16 %v565, %v563
      %v575 = vld [vmem:[%s5] sm:$0xf]
      %v576 = vld [vmem:[%s5 + $0x4] sm:$0xf]
      %v577 = vld [vmem:[%s5 + $0x8] sm:$0xf]
      %v578 = vld [vmem:[%s5 + $0xc] sm:$0xf]
      %v579 = vld [vmem:[%s6] sm:$0x1]
      %v581 = vperm.slane %v579, 0
      %v587 = vunpack.c.l.b16 %v575
      %v588 = vunpack.c.l.b16 %v576
      %v589 = vunpack.c.l.b16 %v577
      %v590 = vunpack.c.l.b16 %v578
      %v591 = vpack.c.b16 %v588, %v587
      %v592 = vpack.c.b16 %v590, %v589
      %v596 = vsel %vm359, %v567, 0
      %v599 = vsel %vm359, %v568, 0
      %v602 = vsel %vm359, %v569, 0
      %v605 = vsel %vm359, %v570, 0
      %v608 = vsel %vm359, %v571, 0
      %v611 = vsel %vm359, %v572, 0
      %v614 = vsel %vm359, %v573, 0
      %v617 = vsel %vm359, %v574, 0
      %619 = vmatpush.bf16.msra.mxu0 0
      %620 = vmatpush.bf16.msra.mxu0 0
      %621 = vmatpush.bf16.msra.mxu0 0
      %622 = vmatpush.bf16.msra.mxu0 0
      %623 = vmatpush.bf16.msra.mxu0 0
      %624 = vmatpush.bf16.msra.mxu0 0
      %625 = vmatpush.bf16.msra.mxu0 %v592
      %626 = vmatpush.bf16.msra.mxu0 %v591
      %627 = vmatmul.bf16.gmra.mxu0 %v596
      %v628 = vpop.f32.mrf.mxu0
      %v629 = vadd.f32 %v581, %v628
      %v630 = vpop.f32.mrf.mxu0
      %v631 = vadd.f32 %v581, %v630
      %632 = vmatmul.bf16.gmra.mxu0 %v599
      %v633 = vpop.f32.mrf.mxu0
      %v634 = vadd.f32 %v581, %v633
      %v635 = vpop.f32.mrf.mxu0
      %v636 = vadd.f32 %v581, %v635
      %637 = vmatmul.bf16.gmra.mxu0 %v602
      %v638 = vpop.f32.mrf.mxu0
      %v639 = vadd.f32 %v581, %v638
      %v640 = vpop.f32.mrf.mxu0
      %v641 = vadd.f32 %v581, %v640
      %642 = vmatmul.bf16.gmra.mxu0 %v605
      %v643 = vpop.f32.mrf.mxu0
      %v644 = vadd.f32 %v581, %v643
      %v645 = vpop.f32.mrf.mxu0
      %v646 = vadd.f32 %v581, %v645
      %647 = vmatmul.bf16.gmra.mxu0 %v608
      %v648 = vpop.f32.mrf.mxu0
      %v649 = vadd.f32 %v581, %v648
      %v650 = vpop.f32.mrf.mxu0
      %v651 = vadd.f32 %v581, %v650
      %652 = vmatmul.bf16.gmra.mxu0 %v611
      %v653 = vpop.f32.mrf.mxu0
      %v654 = vadd.f32 %v581, %v653
      %v655 = vpop.f32.mrf.mxu0
      %v656 = vadd.f32 %v581, %v655
      %657 = vmatmul.bf16.gmra.mxu0 %v614
      %v658 = vpop.f32.mrf.mxu0
      %v659 = vadd.f32 %v581, %v658
      %v660 = vpop.f32.mrf.mxu0
      %v661 = vadd.f32 %v581, %v660
      %662 = vmatmul.bf16.gmra.mxu0 %v617
      %v663 = vpop.f32.mrf.mxu0
      %v664 = vadd.f32 %v581, %v663
      %v665 = vpop.f32.mrf.mxu0
      %v666 = vadd.f32 %v581, %v665
      %667 = vdwg.mxu0
      %668 = vst [vmem:[%s280] sm:$0xff] %v629
      %669 = vst [vmem:[%s280 + $0x8] sm:$0xff] %v631
      %670 = vst [vmem:[%s280 + $0x10] sm:$0xff] %v634
      %671 = vst [vmem:[%s280 + $0x18] sm:$0xff] %v636
      %672 = vst [vmem:[%s280 + $0x20] sm:$0xff] %v639
      %673 = vst [vmem:[%s280 + $0x28] sm:$0xff] %v641
      %674 = vst [vmem:[%s280 + $0x30] sm:$0xff] %v644
      %675 = vst [vmem:[%s280 + $0x38] sm:$0xff] %v646
      %676 = vst [vmem:[%s280 + $0x40] sm:$0xff] %v649
      %677 = vst [vmem:[%s280 + $0x48] sm:$0xff] %v651
      %678 = vst [vmem:[%s280 + $0x50] sm:$0xff] %v654
      %679 = vst [vmem:[%s280 + $0x58] sm:$0xff] %v656
      %680 = vst [vmem:[%s280 + $0x60] sm:$0xff] %v659
      %681 = vst [vmem:[%s280 + $0x68] sm:$0xff] %v661
      %682 = vst [vmem:[%s280 + $0x70] sm:$0xff] %v664
      %683 = vst [vmem:[%s280 + $0x78] sm:$0xff] %v666
      %s684 = smul.u32 16, %s18
      %p685 = scmp.lt.s32.totalorder %s684, 31
      %s686 = scalar_select %p685, %s684, 31
      %s687 = smul.addr %s686, 8
      %s688 = scalar_lea.vmem %s7, %s687
      // Predicated region
      $region49: #{feedforward_forward.1} parent=47 // pred_check
        %p689 = pneg %p188
      $region50: #{feedforward_forward.1} parent=47 // pred_check_branch
        %691 = sbr.rel (%p689) target = $region52
      $region51: #{feedforward_forward.1} parent=47 // pred_region
        %s692 = smul.u32 16, %s18
      $region52: #{feedforward_forward.1} parent=47 // pred_fallthru
        _
    $region48: #{feedforward_forward.1} parent=5 // pred_fallthru
      _
    %p693 = scmp.le.s32.totalorder 2, %s13
    // Predicated region
    $region53: #{feedforward_forward.1} parent=5 // pred_check
      %p694 = pneg %p693
    $region54: #{feedforward_forward.1} parent=5 // pred_check_branch
      %696 = sbr.rel (%p694) target = $region56
    $region55: #{feedforward_forward.1} parent=5 // pred_region
      %s697 = ssub.s32 %s13, 2
      // Predicated region
      $region57: #{feedforward_forward.1} parent=55 // pred_check
        %p698 = pneg %p194
      $region58: #{feedforward_forward.1} parent=55 // pred_check_branch
        %700 = sbr.rel (%p698) target = $region60
      $region59: #{feedforward_forward.1} parent=55 // pred_region
        %s701 = smul.u32 16, %s19
        %p702 = scmp.lt.s32.totalorder %s701, 31
        %s703 = scalar_select %p702, %s701, 31
        %s704 = smul.addr %s703, 8
        %s705 = scalar_lea.vmem %s7, %s704
      $region60: #{feedforward_forward.1} parent=55 // pred_fallthru
        _
    $region56: #{feedforward_forward.1} parent=5 // pred_fallthru
      _
  $region6: #{feedforward_forward.1} parent=0 // loop_footer
    %s17 = sadd.s32 1, %s13
  $region7: #{feedforward_forward.1} parent=0 // loop_footer_branch
    %12 = sbr.rel target = $region3
  $region8: #{feedforward_forward.1} parent=0 // loop_exit
    _

</llo_original>
